<compile_context>
chip_gen: v6e
topology: v6e:2x2x1
jax: 0.10.0
libtpu: 0.0.40
codegen_flags: <defaults>
</compile_context>

<pallas_src>
import functools

import jax
import jax.numpy as jnp
from jax.experimental import pallas as pl
from jax.experimental.pallas import tpu as pltpu


def _orthonormalize_rows(p_t, eps=1e-8):
    """Modified Gram-Schmidt over the rows of p_t: (R, HW).

    Rows of p_t are the columns of P. With HW on the lane axis every projection /
    normalization is a lane-dense op on (1, HW) slabs; rsqrt goes to the EUP slot.
    R is tiny and static, so the loops unroll. Pure jnp/lax -> usable both inside
    the Pallas kernel and in the pure-JAX reference.
    """
    r, hw = p_t.shape
    row_ids = jax.lax.broadcasted_iota(jnp.int32, (r, hw), 0)
    out = jnp.zeros_like(p_t)
    rows = []
    for j in range(r):
        v = p_t[j:j + 1, :]                               # (1, HW) static row slice
        for k in range(j):                                # modified GS: subtract one at a time
            v = v - jnp.sum(rows[k] * v) * rows[k]
        v = v * jax.lax.rsqrt(jnp.sum(v * v) + eps)
        rows.append(v)
        out = jnp.where(row_ids == j, v, out)             # (R, HW) ~ couple of vregs: near-free
    return out


def _powersvd_kernel(m_ref, p_ref, p_out_ref, q_out_ref, *, n_iter):
    # m_ref:     (1, C, HW)  activation block, kept in its native dtype (bf16 stays bf16)
    # p_ref:     (1, R, HW)  P^T (aliased with p_out_ref in HBM)
    # p_out_ref: (1, R, HW)  P^T out
    # q_out_ref: (1, R, C)   Q^T out
    m = m_ref[0]                                          # (C, HW) - no astype: no f32 copy of M
    p_t = p_ref[0]                                        # (R, HW) f32
    for i in range(n_iter):                               # n_iter small & static -> unrolled
        if i == n_iter - 1:
            p_t = _orthonormalize_rows(p_t)
        # Q^T = (M @ P)^T = P^T @ M^T : contract HW of both operands -> (R, C).
        q_t = jax.lax.dot_general(
            p_t.astype(m.dtype), m,
            dimension_numbers=(((1,), (1,)), ((), ())),
            preferred_element_type=jnp.float32)
        # P^T = (M^T @ Q)^T = Q^T @ M : contract C -> (R, HW). Transpose-free on M.
        p_t = jax.lax.dot_general(
            q_t.astype(m.dtype), m,
            dimension_numbers=(((1,), (0,)), ((), ())),
            preferred_element_type=jnp.float32)
    p_out_ref[0] = p_t.astype(p_out_ref.dtype)
    q_out_ref[0] = q_t.astype(q_out_ref.dtype)


def powersvd_pallas(m, p_t_init, *, n_iter):
    """m: (N, C, HW), p_t_init: (N, R, HW) f32 -> (P^T, Q^T) = ((N,R,HW), (N,R,C))."""
    assert n_iter >= 1, "n_iter == 0 leaves the buffers untouched; handled by the caller"
    n, c, hw = m.shape
    r = p_t_init.shape[1]

    # VMEM budget: double-buffered M / P^T input blocks + outputs + kernel temporaries.
    m_bytes = c * hw * m.dtype.itemsize
    p_bytes = r * hw * 4
    q_bytes = r * c * 4
    vmem_needed = 3 * m_bytes + 4 * p_bytes + 2 * q_bytes
    vmem_limit = int(min(max(2 * vmem_needed, 16 * 1024 * 1024), 48 * 1024 * 1024))
    # TODO(synk): for very large activations (C*HW*itemsize beyond ~12 MiB) add an inner
    # HW pipeline (pltpu.emit_pipeline over M with memory_space=pl.ANY, accumulating Q^T)
    # so a per-batch block still fits v7x's 64 MiB VMEM.

    kernel = functools.partial(_powersvd_kernel, n_iter=n_iter)
    p_out, q_out = pl.pallas_call(
        kernel,
        out_shape=(
            jax.ShapeDtypeStruct((n, r, hw), jnp.float32),
            jax.ShapeDtypeStruct((n, r, c), jnp.float32),
        ),
        grid_spec=pltpu.PrefetchScalarGridSpec(
            num_scalar_prefetch=0,
            grid=(n,),
            in_specs=[
                pl.BlockSpec((1, c, hw), lambda b: (b, 0, 0)),
                pl.BlockSpec((1, r, hw), lambda b: (b, 0, 0)),
            ],
            out_specs=(
                pl.BlockSpec((1, r, hw), lambda b: (b, 0, 0)),
                pl.BlockSpec((1, r, c), lambda b: (b, 0, 0)),
            ),
        ),
        # P^T buffer is updated in place (mirrors the PyTorch module's p_buffer).
        input_output_aliases={1: 0},
        compiler_params=pltpu.CompilerParams(
            dimension_semantics=("parallel",),  # batch steps shard across TCs (v7x megacore)
            vmem_limit_bytes=vmem_limit,
        ),
    )(m, p_t_init)
    return p_out, q_out


class PowerSVDServerSendLayer:
    """JAX mirror of the PyTorch module; buffers initialized deterministically.

    The P/Q factor buffers are kept transposed — (N, R, HW) and (N, R, C) — so the
    kernel's vregs/stores are lane-dense; transpose back only if a consumer needs the
    PyTorch (N, HW, R)/(N, C, R) layout.
    """

    def __init__(self, rank, shape, n_iter, send_rank, key=None):
        if key is None:
            key = jax.random.PRNGKey(0)
        n, c, h, w = (int(s) for s in shape)
        k1, k2, k3, k4 = jax.random.split(key, 4)
        self.p_buffer = [jax.random.uniform(k1, (n, rank, h * w), jnp.float32)]
        self.q_buffer = [jax.random.uniform(k2, (n, rank, c), jnp.float32)]
        self.grad_p_buffer = [jax.random.uniform(k3, (n, rank, h * w), jnp.float32)]
        self.grad_q_buffer = [jax.random.uniform(k4, (n, rank, c), jnp.float32)]
        self.iter = int(n_iter)
        self.rank = int(rank)
        self.send_rank = send_rank

    def forward(self, x, pg=None):
        if self.iter == 0:
            # PowerSVD with n_iter == 0 is a no-op on the buffers (matches PyTorch).
            return x
        n, c, h, w = x.shape
        m = x.reshape(n, c, h * w)
        p_t, q_t = powersvd_pallas(m, self.p_buffer[0], n_iter=self.iter)
        self.p_buffer[0] = p_t
        self.q_buffer[0] = q_t
        # TODO(synk): dist.isend(p_buffer[0]) / dist.isend(q_buffer[0]) to send_rank has no
        # single-device Pallas equivalent; the compressed factors stay in the buffers.
        return x

    __call__ = forward


def _powersvd_reference_t(m, p_t_init, n_iter):
    """Pure-JAX mirror of the kernel (same transposed-factor formulation)."""

    def per_batch(mb, pt):
        pt = pt.astype(jnp.float32)
        qt = jnp.zeros((pt.shape[0], mb.shape[0]), jnp.float32)
        for i in range(n_iter):
            if i == n_iter - 1:
                pt = _orthonormalize_rows(pt)
            qt = jax.lax.dot_general(pt, mb, (((1,), (1,)), ((), ())),
                                     preferred_element_type=jnp.float32)
            pt = jax.lax.dot_general(qt, mb, (((1,), (0,)), ((), ())),
                                     preferred_element_type=jnp.float32)
        return pt, qt

    return jax.vmap(per_batch)(m, p_t_init)


if __name__ == "__main__":
    # Small, module-consistent shapes: input NCHW = (2, 4, 16, 16), rank=4, 2 iters.
    N, C, H, W = 2, 4, 16, 16
    RANK, N_ITER = 4, 2

    key = jax.random.PRNGKey(0)
    kx, kmod = jax.random.split(key)
    x = jax.random.normal(kx, (N, C, H, W), jnp.float32)

    layer = PowerSVDServerSendLayer(RANK, (N, C, H, W), N_ITER, send_rank=1, key=kmod)
    # p_buffer is donated to the kernel via input_output_aliases -> keep a copy for the
    # reference computation.
    p_t_init = jnp.copy(layer.p_buffer[0])

    out = layer(x)
    out = jax.block_until_ready(out)
    p_t = jax.block_until_ready(layer.p_buffer[0])
    q_t = jax.block_until_ready(layer.q_buffer[0])

    # Forward returns the input unchanged.
    assert jnp.array_equal(out, x)
    # Kernel matches the pure-JAX reference of the same PowerSVD iteration.
    p_t_ref, q_t_ref = _powersvd_reference_t(x.reshape(N, C, H * W), p_t_init, N_ITER)
    assert p_t.shape == (N, RANK, H * W) and q_t.shape == (N, RANK, C)
    assert jnp.allclose(p_t, p_t_ref, atol=2e-3, rtol=2e-3)
    assert jnp.allclose(q_t, q_t_ref, atol=2e-3, rtol=2e-3)

    print("KERNEL_OK")
</pallas_src>

<mosaic_0001>
module attributes {stable_mosaic.version = 11 : i64} {
  func.func @_powersvd_kernel(%arg0: i32, %arg1: memref<1x4x256xf32, #tpu.memory_space<vmem>>, %arg2: memref<1x4x256xf32, #tpu.memory_space<vmem>>, %arg3: memref<1x4x256xf32, #tpu.memory_space<vmem>>, %arg4: memref<1x4x4xf32, #tpu.memory_space<vmem>>) attributes {dimension_semantics = [#tpu.dimension_semantics<parallel>], iteration_bounds = array<i64: 2>, scalar_prefetch = 0 : i64, scratch_operands = 0 : i64, tpu.core_type = #tpu.core_type<tc>, window_params = [{transform_indices = @transform_0, window_bounds = array<i64: 1, 4, 256>}, {transform_indices = @transform_1, window_bounds = array<i64: 1, 4, 256>}, {transform_indices = @transform_2, window_bounds = array<i64: 1, 4, 256>}, {transform_indices = @transform_3, window_bounds = array<i64: 1, 4, 4>}]} {
    %c0 = arith.constant 0 : index
    %c0_0 = arith.constant 0 : index
    %c0_1 = arith.constant 0 : index
    %0 = vector.load %arg1[%c0, %c0_0, %c0_1] : memref<1x4x256xf32, #tpu.memory_space<vmem>>, vector<1x4x256xf32>
    %1 = vector.shape_cast %0 : vector<1x4x256xf32> to vector<4x256xf32>
    %c0_2 = arith.constant 0 : index
    %c0_3 = arith.constant 0 : index
    %c0_4 = arith.constant 0 : index
    %2 = vector.load %arg2[%c0_2, %c0_3, %c0_4] : memref<1x4x256xf32, #tpu.memory_space<vmem>>, vector<1x4x256xf32>
    %3 = vector.shape_cast %2 : vector<1x4x256xf32> to vector<4x256xf32>
    %cst = arith.constant dense<0.000000e+00> : vector<4x4xf32>
    %4 = tpu.matmul %3, %1, %cst {dimension_numbers = #tpu.dot_dimension_numbers<[1], [1], [0], [0], [0, 0, 1, 0], [], []>} : vector<4x256xf32>, vector<4x256xf32>, vector<4x4xf32> -> vector<4x4xf32>
    %cst_5 = arith.constant dense<0.000000e+00> : vector<4x256xf32>
    %5 = tpu.matmul %4, %1, %cst_5 {dimension_numbers = #tpu.dot_dimension_numbers<[1], [0], [0], [1], [0, 0, 1, 1], [], []>} : vector<4x4xf32>, vector<4x256xf32>, vector<4x256xf32> -> vector<4x256xf32>
    %6 = tpu.iota {dimensions = array<i32: 0>} : vector<4x256xi32>
    %cst_6 = arith.constant 0.000000e+00 : f32
    %7 = vector.broadcast %cst_6 : f32 to vector<4x256xf32>
    %8 = vector.extract_strided_slice %5 {offsets = [0, 0], sizes = [1, 256], strides = [1, 1]} : vector<4x256xf32> to vector<1x256xf32>
    %9 = arith.mulf %8, %8 : vector<1x256xf32>
    %10 = vector.shape_cast %9 : vector<1x256xf32> to vector<1x1x256xf32>
    %cst_7 = arith.constant dense<0.000000e+00> : vector<1xf32>
    %11 = vector.multi_reduction <add>, %10, %cst_7 [1, 2] : vector<1x1x256xf32> to vector<1xf32>
    %12 = vector.shape_cast %11 : vector<1xf32> to vector<1x1x1xf32>
    %13 = vector.extract %12[0, 0, 0] : f32 from vector<1x1x1xf32>
    %cst_8 = arith.constant 9.99999993E-9 : f32
    %14 = arith.addf %13, %cst_8 : f32
    %15 = math.rsqrt %14 : f32
    %16 = vector.broadcast %15 : f32 to vector<1x256xf32>
    %17 = arith.mulf %8, %16 : vector<1x256xf32>
    %c0_i32 = arith.constant 0 : i32
    %18 = vector.broadcast %c0_i32 : i32 to vector<4x256xi32>
    %19 = arith.cmpi eq, %6, %18 : vector<4x256xi32>
    %20 = vector.shape_cast %17 : vector<1x256xf32> to vector<1x256xf32>
    %21 = vector.broadcast %20 : vector<1x256xf32> to vector<4x256xf32>
    %22 = arith.select %19, %21, %7 : vector<4x256xi1>, vector<4x256xf32>
    %23 = vector.extract_strided_slice %5 {offsets = [1, 0], sizes = [1, 256], strides = [1, 1]} : vector<4x256xf32> to vector<1x256xf32>
    %24 = arith.mulf %17, %23 : vector<1x256xf32>
    %25 = vector.shape_cast %24 : vector<1x256xf32> to vector<1x1x256xf32>
    %cst_9 = arith.constant dense<0.000000e+00> : vector<1xf32>
    %26 = vector.multi_reduction <add>, %25, %cst_9 [1, 2] : vector<1x1x256xf32> to vector<1xf32>
    %27 = vector.shape_cast %26 : vector<1xf32> to vector<1x1x1xf32>
    %28 = vector.extract %27[0, 0, 0] : f32 from vector<1x1x1xf32>
    %29 = vector.broadcast %28 : f32 to vector<1x256xf32>
    %30 = arith.mulf %29, %17 : vector<1x256xf32>
    %31 = arith.subf %23, %30 : vector<1x256xf32>
    %32 = arith.mulf %31, %31 : vector<1x256xf32>
    %33 = vector.shape_cast %32 : vector<1x256xf32> to vector<1x1x256xf32>
    %cst_10 = arith.constant dense<0.000000e+00> : vector<1xf32>
    %34 = vector.multi_reduction <add>, %33, %cst_10 [1, 2] : vector<1x1x256xf32> to vector<1xf32>
    %35 = vector.shape_cast %34 : vector<1xf32> to vector<1x1x1xf32>
    %36 = vector.extract %35[0, 0, 0] : f32 from vector<1x1x1xf32>
    %cst_11 = arith.constant 9.99999993E-9 : f32
    %37 = arith.addf %36, %cst_11 : f32
    %38 = math.rsqrt %37 : f32
    %39 = vector.broadcast %38 : f32 to vector<1x256xf32>
    %40 = arith.mulf %31, %39 : vector<1x256xf32>
    %c1_i32 = arith.constant 1 : i32
    %41 = vector.broadcast %c1_i32 : i32 to vector<4x256xi32>
    %42 = arith.cmpi eq, %6, %41 : vector<4x256xi32>
    %43 = vector.shape_cast %40 : vector<1x256xf32> to vector<1x256xf32>
    %44 = vector.broadcast %43 : vector<1x256xf32> to vector<4x256xf32>
    %45 = arith.select %42, %44, %22 : vector<4x256xi1>, vector<4x256xf32>
    %46 = vector.extract_strided_slice %5 {offsets = [2, 0], sizes = [1, 256], strides = [1, 1]} : vector<4x256xf32> to vector<1x256xf32>
    %47 = arith.mulf %17, %46 : vector<1x256xf32>
    %48 = vector.shape_cast %47 : vector<1x256xf32> to vector<1x1x256xf32>
    %cst_12 = arith.constant dense<0.000000e+00> : vector<1xf32>
    %49 = vector.multi_reduction <add>, %48, %cst_12 [1, 2] : vector<1x1x256xf32> to vector<1xf32>
    %50 = vector.shape_cast %49 : vector<1xf32> to vector<1x1x1xf32>
    %51 = vector.extract %50[0, 0, 0] : f32 from vector<1x1x1xf32>
    %52 = vector.broadcast %51 : f32 to vector<1x256xf32>
    %53 = arith.mulf %52, %17 : vector<1x256xf32>
    %54 = arith.subf %46, %53 : vector<1x256xf32>
    %55 = arith.mulf %40, %54 : vector<1x256xf32>
    %56 = vector.shape_cast %55 : vector<1x256xf32> to vector<1x1x256xf32>
    %cst_13 = arith.constant dense<0.000000e+00> : vector<1xf32>
    %57 = vector.multi_reduction <add>, %56, %cst_13 [1, 2] : vector<1x1x256xf32> to vector<1xf32>
    %58 = vector.shape_cast %57 : vector<1xf32> to vector<1x1x1xf32>
    %59 = vector.extract %58[0, 0, 0] : f32 from vector<1x1x1xf32>
    %60 = vector.broadcast %59 : f32 to vector<1x256xf32>
    %61 = arith.mulf %60, %40 : vector<1x256xf32>
    %62 = arith.subf %54, %61 : vector<1x256xf32>
    %63 = arith.mulf %62, %62 : vector<1x256xf32>
    %64 = vector.shape_cast %63 : vector<1x256xf32> to vector<1x1x256xf32>
    %cst_14 = arith.constant dense<0.000000e+00> : vector<1xf32>
    %65 = vector.multi_reduction <add>, %64, %cst_14 [1, 2] : vector<1x1x256xf32> to vector<1xf32>
    %66 = vector.shape_cast %65 : vector<1xf32> to vector<1x1x1xf32>
    %67 = vector.extract %66[0, 0, 0] : f32 from vector<1x1x1xf32>
    %cst_15 = arith.constant 9.99999993E-9 : f32
    %68 = arith.addf %67, %cst_15 : f32
    %69 = math.rsqrt %68 : f32
    %70 = vector.broadcast %69 : f32 to vector<1x256xf32>
    %71 = arith.mulf %62, %70 : vector<1x256xf32>
    %c2_i32 = arith.constant 2 : i32
    %72 = vector.broadcast %c2_i32 : i32 to vector<4x256xi32>
    %73 = arith.cmpi eq, %6, %72 : vector<4x256xi32>
    %74 = vector.shape_cast %71 : vector<1x256xf32> to vector<1x256xf32>
    %75 = vector.broadcast %74 : vector<1x256xf32> to vector<4x256xf32>
    %76 = arith.select %73, %75, %45 : vector<4x256xi1>, vector<4x256xf32>
    %77 = vector.extract_strided_slice %5 {offsets = [3, 0], sizes = [1, 256], strides = [1, 1]} : vector<4x256xf32> to vector<1x256xf32>
    %78 = arith.mulf %17, %77 : vector<1x256xf32>
    %79 = vector.shape_cast %78 : vector<1x256xf32> to vector<1x1x256xf32>
    %cst_16 = arith.constant dense<0.000000e+00> : vector<1xf32>
    %80 = vector.multi_reduction <add>, %79, %cst_16 [1, 2] : vector<1x1x256xf32> to vector<1xf32>
    %81 = vector.shape_cast %80 : vector<1xf32> to vector<1x1x1xf32>
    %82 = vector.extract %81[0, 0, 0] : f32 from vector<1x1x1xf32>
    %83 = vector.broadcast %82 : f32 to vector<1x256xf32>
    %84 = arith.mulf %83, %17 : vector<1x256xf32>
    %85 = arith.subf %77, %84 : vector<1x256xf32>
    %86 = arith.mulf %40, %85 : vector<1x256xf32>
    %87 = vector.shape_cast %86 : vector<1x256xf32> to vector<1x1x256xf32>
    %cst_17 = arith.constant dense<0.000000e+00> : vector<1xf32>
    %88 = vector.multi_reduction <add>, %87, %cst_17 [1, 2] : vector<1x1x256xf32> to vector<1xf32>
    %89 = vector.shape_cast %88 : vector<1xf32> to vector<1x1x1xf32>
    %90 = vector.extract %89[0, 0, 0] : f32 from vector<1x1x1xf32>
    %91 = vector.broadcast %90 : f32 to vector<1x256xf32>
    %92 = arith.mulf %91, %40 : vector<1x256xf32>
    %93 = arith.subf %85, %92 : vector<1x256xf32>
    %94 = arith.mulf %71, %93 : vector<1x256xf32>
    %95 = vector.shape_cast %94 : vector<1x256xf32> to vector<1x1x256xf32>
    %cst_18 = arith.constant dense<0.000000e+00> : vector<1xf32>
    %96 = vector.multi_reduction <add>, %95, %cst_18 [1, 2] : vector<1x1x256xf32> to vector<1xf32>
    %97 = vector.shape_cast %96 : vector<1xf32> to vector<1x1x1xf32>
    %98 = vector.extract %97[0, 0, 0] : f32 from vector<1x1x1xf32>
    %99 = vector.broadcast %98 : f32 to vector<1x256xf32>
    %100 = arith.mulf %99, %71 : vector<1x256xf32>
    %101 = arith.subf %93, %100 : vector<1x256xf32>
    %102 = arith.mulf %101, %101 : vector<1x256xf32>
    %103 = vector.shape_cast %102 : vector<1x256xf32> to vector<1x1x256xf32>
    %cst_19 = arith.constant dense<0.000000e+00> : vector<1xf32>
    %104 = vector.multi_reduction <add>, %103, %cst_19 [1, 2] : vector<1x1x256xf32> to vector<1xf32>
    %105 = vector.shape_cast %104 : vector<1xf32> to vector<1x1x1xf32>
    %106 = vector.extract %105[0, 0, 0] : f32 from vector<1x1x1xf32>
    %cst_20 = arith.constant 9.99999993E-9 : f32
    %107 = arith.addf %106, %cst_20 : f32
    %108 = math.rsqrt %107 : f32
    %109 = vector.broadcast %108 : f32 to vector<1x256xf32>
    %110 = arith.mulf %101, %109 : vector<1x256xf32>
    %c3_i32 = arith.constant 3 : i32
    %111 = vector.broadcast %c3_i32 : i32 to vector<4x256xi32>
    %112 = arith.cmpi eq, %6, %111 : vector<4x256xi32>
    %113 = vector.shape_cast %110 : vector<1x256xf32> to vector<1x256xf32>
    %114 = vector.broadcast %113 : vector<1x256xf32> to vector<4x256xf32>
    %115 = arith.select %112, %114, %76 : vector<4x256xi1>, vector<4x256xf32>
    %cst_21 = arith.constant dense<0.000000e+00> : vector<4x4xf32>
    %116 = tpu.matmul %115, %1, %cst_21 {dimension_numbers = #tpu.dot_dimension_numbers<[1], [1], [0], [0], [0, 0, 1, 0], [], []>} : vector<4x256xf32>, vector<4x256xf32>, vector<4x4xf32> -> vector<4x4xf32>
    %cst_22 = arith.constant dense<0.000000e+00> : vector<4x256xf32>
    %117 = tpu.matmul %116, %1, %cst_22 {dimension_numbers = #tpu.dot_dimension_numbers<[1], [0], [0], [1], [0, 0, 1, 1], [], []>} : vector<4x4xf32>, vector<4x256xf32>, vector<4x256xf32> -> vector<4x256xf32>
    %c0_23 = arith.constant 0 : index
    %c0_24 = arith.constant 0 : index
    %c0_25 = arith.constant 0 : index
    %118 = vector.load %arg3[%c0_23, %c0_24, %c0_25] : memref<1x4x256xf32, #tpu.memory_space<vmem>>, vector<1x4x256xf32>
    %119 = vector.shape_cast %118 : vector<1x4x256xf32> to vector<4x256xf32>
    %120 = vector.shape_cast %117 : vector<4x256xf32> to vector<1x4x256xf32>
    tpu.vector_store %arg3[%c0_23, %c0_24, %c0_25], %120 {strides = array<i32>} : memref<1x4x256xf32, #tpu.memory_space<vmem>>, vector<1x4x256xf32>,
    %c0_26 = arith.constant 0 : index
    %c0_27 = arith.constant 0 : index
    %c0_28 = arith.constant 0 : index
    %121 = vector.load %arg4[%c0_26, %c0_27, %c0_28] : memref<1x4x4xf32, #tpu.memory_space<vmem>>, vector<1x4x4xf32>
    %122 = vector.shape_cast %121 : vector<1x4x4xf32> to vector<4x4xf32>
    %123 = vector.shape_cast %116 : vector<4x4xf32> to vector<1x4x4xf32>
    tpu.vector_store %arg4[%c0_26, %c0_27, %c0_28], %123 {strides = array<i32>} : memref<1x4x4xf32, #tpu.memory_space<vmem>>, vector<1x4x4xf32>,
    return
  }
  func.func @transform_0(%arg0: i32) -> (i32, i32, i32) {
    %c0_i32 = arith.constant 0 : i32
    %c0_i32_0 = arith.constant 0 : i32
    %c0_i32_1 = arith.constant 0 : i32
    return %arg0, %c0_i32, %c0_i32_0 : i32, i32, i32
  }
  func.func @transform_1(%arg0: i32) -> (i32, i32, i32) {
    %c0_i32 = arith.constant 0 : i32
    %c0_i32_0 = arith.constant 0 : i32
    %c0_i32_1 = arith.constant 0 : i32
    return %arg0, %c0_i32, %c0_i32_0 : i32, i32, i32
  }
  func.func @transform_2(%arg0: i32) -> (i32, i32, i32) {
    %c0_i32 = arith.constant 0 : i32
    %c0_i32_0 = arith.constant 0 : i32
    %c0_i32_1 = arith.constant 0 : i32
    return %arg0, %c0_i32, %c0_i32_0 : i32, i32, i32
  }
  func.func @transform_3(%arg0: i32) -> (i32, i32, i32) {
    %c0_i32 = arith.constant 0 : i32
    %c0_i32_0 = arith.constant 0 : i32
    %c0_i32_1 = arith.constant 0 : i32
    return %arg0, %c0_i32, %c0_i32_0 : i32, i32, i32
  }
}

</mosaic_0001>

<llo_original>
// kernel: tpu_custom_call.1
$region0: #{tpu_custom_call.1}
  #allocation0 [shape = 'u32[]', space=smem, size = 0x4, offset = 0x4, fixed_abs, tag = 'smem constant byte address 0x4 - core index']
  #allocation1 [shape = 'u32[144,128]{1,0:T(1,128)}', space=vmem, size = 0x12000, scoped, tag = 'internal scratch']
  %s0 = inlined_call_operand.vmem [shape: f32[2,4,256], index: 0, kind: input, shape index: {}]
  %s1 = inlined_call_operand.hbm [shape: f32[2,4,256], index: 1, kind: input, shape index: {}, may-alias: {1,2}]
  %s2 = inlined_call_operand.hbm [shape: f32[2,4,256], index: 2, kind: output, shape index: {0}, may-alias: {1,2}]
  %s3 = inlined_call_operand.hbm [shape: f32[2,4,4], index: 3, kind: output, shape index: {1}]
  %4 = xla_tuple %s2, %s3
  %s5 = sld [smem:[#allocation0]]
  $region53: #{tpu_custom_call.1} parent=0
    _
  %s7 = ssub.s32 1, %s5
  %s8 = scalar_select 0, %s7, %s5
  $region1: #{tpu_custom_call.1} parent=0
    #allocation2 [shape = 'u8[8192]{0}', space=vmem, size = 0x2000, scoped, tag = 'input window, operand 1']
    #allocation3 [shape = 's32[2]{0}', space=sflag, size = 0x8, scoped, tag = 'scoped memory for tpu_custom_call.1']
    #allocation4 [shape = 's32[2]{0}', space=sflag, size = 0x8, scoped, tag = 'scoped memory for tpu_custom_call.1']
    #allocation5 [shape = 'u8[8192]{0}', space=vmem, size = 0x2000, scoped, tag = 'output window, operand 0']
    #allocation6 [shape = 'u8[4096]{0}', space=vmem, size = 0x1000, scoped, tag = 'output window, operand 1']
    #allocation7 [shape = 's32[2]{0}', space=sflag, size = 0x8, scoped, tag = 'scoped memory for tpu_custom_call.1']
    %9 = vsyncpa [#allocation3], 0
    %s10 = scalar_lea.sflag [#allocation3], 1
    %11 = vsyncpa %s10, 0
    %12 = vsyncpa [#allocation4], 0
    %s13 = scalar_lea.sflag [#allocation4], 1
    %14 = vsyncpa %s13, 0
    %15 = vsyncpa [#allocation7], 0
    %s16 = scalar_lea.sflag [#allocation7], 1
    %17 = vsyncpa %s16, 0
    loop: start=0, step=1, limit=4
    $region2: #{tpu_custom_call.1} parent=1 // loop_pre_header
      _
    $region3: #{tpu_custom_call.1} parent=1 // loop_header
      %s19 = sphi 0, %s23
      %p20 = scmp.ge.s32.totalorder %s19, 4
      %s29 = sphi 0, %s31
      %s32 = sphi 0, %s29
      %s33 = sphi 0, %s32
      %s49 = sphi 0, %s33
      %s55 = sphi 0, %s57
      %s58 = sphi 0, %s55
      %s59 = sphi 0, %s58
      %s75 = sphi 0, %s59
      %s81 = sphi 0, %s83
      %s84 = sphi 0, %s81
      %s85 = sphi 0, %s84
      %s101 = sphi 0, %s85
      %s107 = sphi 0, %s109
      %s110 = sphi 0, %s107
      %s111 = sphi 0, %s110
      %s127 = sphi 0, %s111
    $region4: #{tpu_custom_call.1} parent=1 // loop_header_branch
      %22 = sbr.rel (%p20) target = $region8
    $region5: #{tpu_custom_call.1} parent=1 // loop_body
      %s24 = ssub.s32 %s19, 1
      %s25 = ssub.s32 %s19, 2
      %s26 = sadd.s32 %s19, 1
      %s27 = ssub.s32 %s19, %s26
      %p28 = scmp.eq.s32.totalorder %s27, 0
      %s30 = sadd.s32 %s29, 1
      %s31 = scalar_select %p28, %s29, %s30
      %p34 = pneg %p28
      %p35 = scmp.eq.s32.totalorder %s19, 1
      %p36 = por %p34, %p35
      %p37 = scmp.ne.s32.totalorder %s29, %s32
      %p38 = scmp.eq.s32.totalorder %s19, 0
      %p39 = por %p37, %p38
      %p40 = scmp.ne.s32.totalorder %s29, %s32
      %p41 = scmp.eq.s32.totalorder %s24, 1
      %p42 = por %p40, %p41
      %p43 = scmp.ne.s32.totalorder %s32, %s33
      %p44 = scmp.eq.s32.totalorder %s24, 0
      %p45 = por %p43, %p44
      %p46 = scmp.ne.s32.totalorder %s32, %s33
      %p47 = scmp.eq.s32.totalorder %s25, 1
      %p48 = por %p46, %p47
      %p50 = scmp.ne.s32.totalorder %s33, %s49
      %p51 = scmp.eq.s32.totalorder %s25, 0
      %p52 = por %p50, %p51
      %s53 = ssub.s32 %s19, %s26
      %p54 = scmp.eq.s32.totalorder %s53, 0
      %s56 = sadd.s32 %s55, 1
      %s57 = scalar_select %p54, %s55, %s56
      %p60 = pneg %p54
      %p61 = scmp.eq.s32.totalorder %s19, 1
      %p62 = por %p60, %p61
      %p63 = scmp.ne.s32.totalorder %s55, %s58
      %p64 = scmp.eq.s32.totalorder %s19, 0
      %p65 = por %p63, %p64
      %p66 = scmp.ne.s32.totalorder %s55, %s58
      %p67 = scmp.eq.s32.totalorder %s24, 1
      %p68 = por %p66, %p67
      %p69 = scmp.ne.s32.totalorder %s58, %s59
      %p70 = scmp.eq.s32.totalorder %s24, 0
      %p71 = por %p69, %p70
      %p72 = scmp.ne.s32.totalorder %s58, %s59
      %p73 = scmp.eq.s32.totalorder %s25, 1
      %p74 = por %p72, %p73
      %p76 = scmp.ne.s32.totalorder %s59, %s75
      %p77 = scmp.eq.s32.totalorder %s25, 0
      %p78 = por %p76, %p77
      %s79 = ssub.s32 %s19, %s26
      %p80 = scmp.eq.s32.totalorder %s79, 0
      %s82 = sadd.s32 %s81, 1
      %s83 = scalar_select %p80, %s81, %s82
      %p86 = pneg %p80
      %p87 = scmp.eq.s32.totalorder %s19, 1
      %p88 = por %p86, %p87
      %p89 = scmp.ne.s32.totalorder %s81, %s84
      %p90 = scmp.eq.s32.totalorder %s19, 0
      %p91 = por %p89, %p90
      %p92 = scmp.ne.s32.totalorder %s81, %s84
      %p93 = scmp.eq.s32.totalorder %s24, 1
      %p94 = por %p92, %p93
      %p95 = scmp.ne.s32.totalorder %s84, %s85
      %p96 = scmp.eq.s32.totalorder %s24, 0
      %p97 = por %p95, %p96
      %p98 = scmp.ne.s32.totalorder %s84, %s85
      %p99 = scmp.eq.s32.totalorder %s25, 1
      %p100 = por %p98, %p99
      %p102 = scmp.ne.s32.totalorder %s85, %s101
      %p103 = scmp.eq.s32.totalorder %s25, 0
      %p104 = por %p102, %p103
      %s105 = ssub.s32 %s19, %s26
      %p106 = scmp.eq.s32.totalorder %s105, 0
      %s108 = sadd.s32 %s107, 1
      %s109 = scalar_select %p106, %s107, %s108
      %p112 = pneg %p106
      %p113 = scmp.eq.s32.totalorder %s19, 1
      %p114 = por %p112, %p113
      %p115 = scmp.ne.s32.totalorder %s107, %s110
      %p116 = scmp.eq.s32.totalorder %s19, 0
      %p117 = por %p115, %p116
      %p118 = scmp.ne.s32.totalorder %s107, %s110
      %p119 = scmp.eq.s32.totalorder %s24, 1
      %p120 = por %p118, %p119
      %p121 = scmp.ne.s32.totalorder %s110, %s111
      %p122 = scmp.eq.s32.totalorder %s24, 0
      %p123 = por %p121, %p122
      %p124 = scmp.ne.s32.totalorder %s110, %s111
      %p125 = scmp.eq.s32.totalorder %s25, 1
      %p126 = por %p124, %p125
      %p128 = scmp.ne.s32.totalorder %s111, %s127
      %p129 = scmp.eq.s32.totalorder %s25, 0
      %p130 = por %p128, %p129
      %p131 = scmp.le.s32.totalorder 1, %s19
      %p132 = scmp.lt.s32.totalorder %s19, 3
      %p133 = pnand %p131, %p132
      %p134 = pneg %p133
      // Predicated region
      $region9: #{tpu_custom_call.1} parent=5 // pred_check
        _
      $region10: #{tpu_custom_call.1} parent=5 // pred_check_branch
        %136 = sbr.rel (%p133) target = $region12
      $region11: #{tpu_custom_call.1} parent=5 // pred_region
        %s137 = ssub.s32 %s19, 1
      $region12: #{tpu_custom_call.1} parent=5 // pred_fallthru
        _
      %p138 = scmp.lt.s32.totalorder %s19, 2
      // Predicated region
      $region13: #{tpu_custom_call.1} parent=5 // pred_check
        %p139 = pneg %p138
      $region14: #{tpu_custom_call.1} parent=5 // pred_check_branch
        %141 = sbr.rel (%p139) target = $region16
      $region15: #{tpu_custom_call.1} parent=5 // pred_region
        // Predicated region
        $region17: #{tpu_custom_call.1} parent=15 // pred_check
          %p142 = pneg %p39
        $region18: #{tpu_custom_call.1} parent=15 // pred_check_branch
          %144 = sbr.rel (%p142) target = $region20
        $region19: #{tpu_custom_call.1} parent=15 // pred_region
          %p145 = scmp.lt.s32.totalorder %s19, 1
          %s146 = scalar_select %p145, %s19, 1
          %s147 = smul.addr %s146, 2
          %s148 = smul.addr %s147, 4
          %s149 = scalar_lea.vmem %s0, %s148
        $region20: #{tpu_custom_call.1} parent=15 // pred_fallthru
          _
        // Predicated region
        $region21: #{tpu_custom_call.1} parent=15 // pred_check
          %p150 = pneg %p65
        $region22: #{tpu_custom_call.1} parent=15 // pred_check_branch
          %152 = sbr.rel (%p150) target = $region24
        $region23: #{tpu_custom_call.1} parent=15 // pred_region
          %s153 = sand.u32 %s55, 1
          %s154 = scalar_lea.sflag [#allocation3], %s153
          %s155 = sand.u32 %s55, 1
          %s156 = smul.addr %s155, 8
          %s157 = scalar_lea.vmem [#allocation2], %s156
          %s159 = ssub.s32 128, 128
          %160 = vsyncadd %s154, %s159
          %s161 = smul.addr %s19, 2
          %s162 = smul.addr %s161, 64
          %s163 = scalar_lea.hbm %s1, %s162
          %s165 = sshll.u32 %s157, 4
          %s166 = int_to_ptr.vmem [resolvable:$true] %s165
          %168 = dma.hbm_to_vmem [thread:$0]  %s163, 128, %s166, %s154
        $region24: #{tpu_custom_call.1} parent=15 // pred_fallthru
          _
      $region16: #{tpu_custom_call.1} parent=5 // pred_fallthru
        _
      %p169 = scmp.le.s32.totalorder 1, %s19
      %p170 = scmp.lt.s32.totalorder %s19, 3
      %p171 = pnand %p169, %p170
      %p172 = pneg %p171
      // Predicated region
      $region25: #{tpu_custom_call.1} parent=5 // pred_check
        _
      $region26: #{tpu_custom_call.1} parent=5 // pred_check_branch
        %174 = sbr.rel (%p171) target = $region28
      $region27: #{tpu_custom_call.1} parent=5 // pred_region
        %s175 = ssub.s32 %s19, 1
        %s176 = sand.u32 %s58, 1
        %s177 = scalar_lea.sflag [#allocation3], %s176
        %s178 = sand.u32 %s58, 1
        %s179 = smul.addr %s178, 8
        %s180 = scalar_lea.vmem [#allocation2], %s179
        // Predicated region
        $region29: #{tpu_custom_call.1} parent=27 // pred_check
          %p181 = pneg %p71
        $region30: #{tpu_custom_call.1} parent=27 // pred_check_branch
          %183 = sbr.rel (%p181) target = $region32
        $region31: #{tpu_custom_call.1} parent=27 // pred_region
          %184 = dma.done %s177, 128
        $region32: #{tpu_custom_call.1} parent=27 // pred_fallthru
          _
        %p185 = scmp.lt.s32.totalorder %s24, 1
        %s186 = scalar_select %p185, %s24, 1
        %s187 = smul.addr %s186, 2
        %s188 = smul.addr %s187, 4
        %s189 = scalar_lea.vmem %s0, %s188
        %p190 = pneg %p45
        %p191 = pneg %p42
        %s192 = sand.u32 %s58, 1
        %s193 = scalar_lea.sflag [#allocation3], %s192
        %s194 = sand.u32 %s58, 1
        %s195 = smul.addr %s194, 8
        %s196 = scalar_lea.vmem [#allocation2], %s195
        %p197 = pneg %p71
        %p198 = pneg %p68
        %p199 = pneg %p97
        %p200 = pneg %p94
        %s201 = sand.u32 %s84, 1
        %s202 = scalar_lea.sflag [#allocation4], %s201
        %s203 = sand.u32 %s84, 1
        %s204 = smul.addr %s203, 8
        %s205 = scalar_lea.vmem [#allocation5], %s204
        %p206 = pneg %p123
        %p207 = pneg %p120
        %s208 = sand.u32 %s110, 1
        %s209 = scalar_lea.sflag [#allocation7], %s208
        %s210 = sand.u32 %s110, 1
        %s211 = smul.addr %s210, 4
        %s212 = scalar_lea.vmem [#allocation6], %s211
        %p213 = scmp.lt.s32.totalorder %s24, 1
        %s214 = scalar_select %p213, %s24, 1
        %s215 = smul.addr %s214, 2
        %s216 = smul.addr %s215, 4
        %s217 = scalar_lea.vmem %s0, %s216
        %v218 = vld [vmem:[%s217] sm:$0xff]
        %v219 = vld [vmem:[%s180] sm:$0xff]
        %v221 = vcombine.high %v219, %v219
        %v224 = vcombine.high %v218, %v218
        %226 = vmatprep.subr.mxu0 0.0
        %227 = vmatpush1.xpose.msra.mxu0 0.0
        %228 = vmatprep.subr.mxu0 0.0
        %229 = vmatpush1.xpose.msra.mxu0 0.0
        %230 = vmatprep.subr.mxu0 0.0
        %231 = vmatpush1.xpose.msra.mxu0 0.0
        %232 = vmatprep.subr.mxu0 0.0
        %233 = vmatpush1.xpose.msra.mxu0 0.0
        %234 = vmatprep.subr.mxu0 0.0
        %235 = vmatpush1.xpose.msra.mxu0 0.0
        %236 = vmatprep.subr.mxu0 0.0
        %237 = vmatpush1.xpose.msra.mxu0 0.0
        %238 = vmatprep.subr.mxu0 0.0
        %239 = vmatpush1.xpose.msra.mxu0 0.0
        %240 = vmatprep.subr.mxu0 0.0
        %241 = vmatpush1.xpose.msra.mxu0 0.0
        %242 = vmatprep.subr.mxu0 0.0
        %243 = vmatpush1.xpose.msra.mxu0 0.0
        %244 = vmatprep.subr.mxu0 0.0
        %245 = vmatpush1.xpose.msra.mxu0 0.0
        %246 = vmatprep.subr.mxu0 0.0
        %247 = vmatpush1.xpose.msra.mxu0 0.0
        %248 = vmatprep.subr.mxu0 0.0
        %249 = vmatpush1.xpose.msra.mxu0 0.0
        %250 = vmatprep.subr.mxu0 0.0
        %251 = vmatpush1.xpose.msra.mxu0 0.0
        %252 = vmatprep.subr.mxu0 0.0
        %253 = vmatpush1.xpose.msra.mxu0 0.0
        %254 = vmatprep.subr.mxu0 0.0
        %255 = vmatpush1.xpose.msra.mxu0 0.0
        %256 = vmatprep.subr.mxu0 %v224
        %257 = vmatpush1.xpose.msra.mxu0 %v218
        %258 = vmatprep.subr.mxu0 0.0
        %259 = vmatpush2.xpose.msra.mxu0 0.0
        %260 = vmatprep.subr.mxu0 0.0
        %261 = vmatpush2.xpose.msra.mxu0 0.0
        %262 = vmatprep.subr.mxu0 0.0
        %263 = vmatpush2.xpose.msra.mxu0 0.0
        %264 = vmatprep.subr.mxu0 0.0
        %265 = vmatpush2.xpose.msra.mxu0 0.0
        %266 = vmatprep.subr.mxu0 0.0
        %267 = vmatpush2.xpose.msra.mxu0 0.0
        %268 = vmatprep.subr.mxu0 0.0
        %269 = vmatpush2.xpose.msra.mxu0 0.0
        %270 = vmatprep.subr.mxu0 0.0
        %271 = vmatpush2.xpose.msra.mxu0 0.0
        %272 = vmatprep.subr.mxu0 0.0
        %273 = vmatpush2.xpose.msra.mxu0 0.0
        %274 = vmatprep.subr.mxu0 0.0
        %275 = vmatpush2.xpose.msra.mxu0 0.0
        %276 = vmatprep.subr.mxu0 0.0
        %277 = vmatpush2.xpose.msra.mxu0 0.0
        %278 = vmatprep.subr.mxu0 0.0
        %279 = vmatpush2.xpose.msra.mxu0 0.0
        %280 = vmatprep.subr.mxu0 0.0
        %281 = vmatpush2.xpose.msra.mxu0 0.0
        %282 = vmatprep.subr.mxu0 0.0
        %283 = vmatpush2.xpose.msra.mxu0 0.0
        %284 = vmatprep.subr.mxu0 0.0
        %285 = vmatpush2.xpose.msra.mxu0 0.0
        %286 = vmatprep.subr.mxu0 0.0
        %287 = vmatpush2.xpose.msra.mxu0 0.0
        %288 = vmatprep.subr.mxu0 0.0
        %289 = vmatpush2.xpose.msra.mxu0 0.0
        %290 = vmatprep.mubr.f32.mxu0 %v221
        %291 = vmatmul.mubr.f32.gmra.mxu0 %v219
        %v292 = vpop.f32.mrf.mxu0
        %v293 = vadd.f32 0.0, %v292
        %v294 = vpop.f32.mrf.mxu0
        %295 = vdwg.mxu0
        %vm296 = vcmask 31744
        %v298 = vsel %vm296, %v293, 0
        %vm300 = vcmask 1043456
        %v301 = vsel %vm300, %v218, 0
        %v303 = vsel %vm300, %v224, 0
        %305 = vmatprep.subr.mxu0 0.0
        %306 = vmatpush1.msra.mxu0 0.0
        %307 = vmatprep.subr.mxu0 0.0
        %308 = vmatpush1.msra.mxu0 0.0
        %309 = vmatprep.subr.mxu0 0.0
        %310 = vmatpush1.msra.mxu0 0.0
        %311 = vmatprep.subr.mxu0 0.0
        %312 = vmatpush1.msra.mxu0 0.0
        %313 = vmatprep.subr.mxu0 0.0
        %314 = vmatpush1.msra.mxu0 0.0
        %315 = vmatprep.subr.mxu0 0.0
        %316 = vmatpush1.msra.mxu0 0.0
        %317 = vmatprep.subr.mxu0 0.0
        %318 = vmatpush1.msra.mxu0 0.0
        %319 = vmatprep.subr.mxu0 0.0
        %320 = vmatpush1.msra.mxu0 0.0
        %321 = vmatprep.subr.mxu0 0.0
        %322 = vmatpush1.msra.mxu0 0.0
        %323 = vmatprep.subr.mxu0 0.0
        %324 = vmatpush1.msra.mxu0 0.0
        %325 = vmatprep.subr.mxu0 0.0
        %326 = vmatpush1.msra.mxu0 0.0
        %327 = vmatprep.subr.mxu0 0.0
        %328 = vmatpush1.msra.mxu0 0.0
        %329 = vmatprep.subr.mxu0 0.0
        %330 = vmatpush1.msra.mxu0 0.0
        %331 = vmatprep.subr.mxu0 0.0
        %332 = vmatpush1.msra.mxu0 0.0
        %333 = vmatprep.subr.mxu0 0.0
        %334 = vmatpush1.msra.mxu0 0.0
        %335 = vmatprep.subr.mxu0 %v303
        %336 = vmatpush1.msra.mxu0 %v301
        %337 = vmatprep.subr.mxu0 0.0
        %338 = vmatpush2.msra.mxu0 0.0
        %339 = vmatprep.subr.mxu0 0.0
        %340 = vmatpush2.msra.mxu0 0.0
        %341 = vmatprep.subr.mxu0 0.0
        %342 = vmatpush2.msra.mxu0 0.0
        %343 = vmatprep.subr.mxu0 0.0
        %344 = vmatpush2.msra.mxu0 0.0
        %345 = vmatprep.subr.mxu0 0.0
        %346 = vmatpush2.msra.mxu0 0.0
        %347 = vmatprep.subr.mxu0 0.0
        %348 = vmatpush2.msra.mxu0 0.0
        %349 = vmatprep.subr.mxu0 0.0
        %350 = vmatpush2.msra.mxu0 0.0
        %351 = vmatprep.subr.mxu0 0.0
        %352 = vmatpush2.msra.mxu0 0.0
        %353 = vmatprep.subr.mxu0 0.0
        %354 = vmatpush2.msra.mxu0 0.0
        %355 = vmatprep.subr.mxu0 0.0
        %356 = vmatpush2.msra.mxu0 0.0
        %357 = vmatprep.subr.mxu0 0.0
        %358 = vmatpush2.msra.mxu0 0.0
        %359 = vmatprep.subr.mxu0 0.0
        %360 = vmatpush2.msra.mxu0 0.0
        %361 = vmatprep.subr.mxu0 0.0
        %362 = vmatpush2.msra.mxu0 0.0
        %363 = vmatprep.subr.mxu0 0.0
        %364 = vmatpush2.msra.mxu0 0.0
        %365 = vmatprep.subr.mxu0 0.0
        %366 = vmatpush2.msra.mxu0 0.0
        %367 = vmatprep.subr.mxu0 0.0
        %368 = vmatpush2.msra.mxu0 0.0
        %369 = vmatprep.mubr.f32.mxu0 0.0
        %370 = vmatmul.mubr.f32.gmra.mxu0 %v298
        %v371 = vpop.f32.mrf.mxu0
        %v372 = vadd.f32 0.0, %v371
        %v373 = vpop.f32.mrf.mxu0
        %v374 = vadd.f32 0.0, %v373
        %375 = vdwg.mxu0
        %v376 = vlaneseq
        %v377 = vshrl.u32 %v376, 7
        %v378 = vmul.f32 %v372, %v372
        %v379 = vmul.f32 %v374, %v374
        %vm380 = vcmask 1040384
        %v381 = vsel %vm380, %v378, 0.0
        %v382 = vsel %vm380, %v379, 0.0
        %v383 = vadd.f32 %v381, %v382
        %384 = vadd.xlane.f32.xlu0 %v383
        %v385 = vpop.xlane.xlu0 %384
        %v386 = vrot.slane %v385, 4
        %v387 = vadd.f32 %v385, %v386
        %v388 = vrot.slane %v387, 2
        %v389 = vadd.f32 %v387, %v388
        %v390 = vrot.slane %v389, 1
        %v391 = vadd.f32 %v389, %v390
        %s392 = vtos %v391
        %s393 = sadd.f32 %s392, 1e-08
        %v394 = vstv %s393
        %v395 = vrsqrt.pop %v394
        %s396 = vtos %v395
        %v397 = vstv %s396
        %v398 = vmul.f32 %v372, %v397
        %v399 = vmul.f32 %v374, %v397
        %vm400 = vcmp.eq.s32.totalorder %v377, 0
        %v401 = vlaneseq
        %v402 = vshrl.u32 %v401, 7
        %v403 = vsub.s32 0, %v402
        %v404 = vrot.slane %v398, %v403
        %v405 = vlaneseq
        %v406 = vshrl.u32 %v405, 7
        %v407 = vsub.s32 0, %v406
        %v408 = vrot.slane %v399, %v407
        %v409 = vsel %vm400, %v404, 0.0
        %v410 = vsel %vm400, %v408, 0.0
        %v413 = vrot.slane %v372, 1
        %v414 = vrot.slane %v374, 1
        %v417 = vmul.f32 %v398, %v413
        %v418 = vmul.f32 %v399, %v414
        %v419 = vsel %vm380, %v417, 0.0
        %v420 = vsel %vm380, %v418, 0.0
        %v421 = vadd.f32 %v419, %v420
        %422 = vadd.xlane.f32.xlu0 %v421
        %v423 = vpop.xlane.xlu0 %422
        %v424 = vrot.slane %v423, 4
        %v425 = vadd.f32 %v423, %v424
        %v426 = vrot.slane %v425, 2
        %v427 = vadd.f32 %v425, %v426
        %v428 = vrot.slane %v427, 1
        %v429 = vadd.f32 %v427, %v428
        %s430 = vtos %v429
        %v431 = vstv %s430
        %v432 = vmul.f32 %v431, %v398
        %v433 = vmul.f32 %v431, %v399
        %v436 = vrot.slane %v432, 7
        %v437 = vrot.slane %v433, 7
        %v440 = vsub.f32 %v372, %v436
        %v441 = vsub.f32 %v374, %v437
        %v442 = vmul.f32 %v440, %v440
        %v443 = vmul.f32 %v441, %v441
        %v446 = vrot.slane %v442, 1
        %v447 = vrot.slane %v443, 1
        %v450 = vsel %vm380, %v446, 0.0
        %v451 = vsel %vm380, %v447, 0.0
        %v452 = vadd.f32 %v450, %v451
        %453 = vadd.xlane.f32.xlu0 %v452
        %v454 = vpop.xlane.xlu0 %453
        %v455 = vrot.slane %v454, 4
        %v456 = vadd.f32 %v454, %v455
        %v457 = vrot.slane %v456, 2
        %v458 = vadd.f32 %v456, %v457
        %v459 = vrot.slane %v458, 1
        %v460 = vadd.f32 %v458, %v459
        %s461 = vtos %v460
        %s462 = sadd.f32 %s461, 1e-08
        %v463 = vstv %s462
        %v464 = vrsqrt.pop %v463
        %s465 = vtos %v464
        %v466 = vstv %s465
        %v467 = vmul.f32 %v440, %v466
        %v468 = vmul.f32 %v441, %v466
        %vm469 = vcmp.eq.s32.totalorder %v377, 1
        %v470 = vlaneseq
        %v471 = vshrl.u32 %v470, 7
        %v472 = vsub.s32 1, %v471
        %v473 = vrot.slane %v467, %v472
        %v474 = vlaneseq
        %v475 = vshrl.u32 %v474, 7
        %v476 = vsub.s32 1, %v475
        %v477 = vrot.slane %v468, %v476
        %v478 = vsel %vm469, %v473, %v409
        %v479 = vsel %vm469, %v477, %v410
        %v480 = vrot.slane %v372, 2
        %v481 = vrot.slane %v374, 2
        %v484 = vmul.f32 %v398, %v480
        %v485 = vmul.f32 %v399, %v481
        %v486 = vsel %vm380, %v484, 0.0
        %v487 = vsel %vm380, %v485, 0.0
        %v488 = vadd.f32 %v486, %v487
        %489 = vadd.xlane.f32.xlu0 %v488
        %v490 = vpop.xlane.xlu0 %489
        %v491 = vrot.slane %v490, 4
        %v492 = vadd.f32 %v490, %v491
        %v493 = vrot.slane %v492, 2
        %v494 = vadd.f32 %v492, %v493
        %v495 = vrot.slane %v494, 1
        %v496 = vadd.f32 %v494, %v495
        %s497 = vtos %v496
        %v498 = vstv %s497
        %v499 = vmul.f32 %v498, %v398
        %v500 = vmul.f32 %v498, %v399
        %v503 = vrot.slane %v499, 6
        %v504 = vrot.slane %v500, 6
        %v507 = vsub.f32 %v372, %v503
        %v508 = vsub.f32 %v374, %v504
        %v511 = vrot.slane %v507, 1
        %v512 = vrot.slane %v508, 1
        %v515 = vmul.f32 %v467, %v511
        %v516 = vmul.f32 %v468, %v512
        %v519 = vrot.slane %v515, 1
        %v520 = vrot.slane %v516, 1
        %v523 = vsel %vm380, %v519, 0.0
        %v524 = vsel %vm380, %v520, 0.0
        %v525 = vadd.f32 %v523, %v524
        %526 = vadd.xlane.f32.xlu0 %v525
        %v527 = vpop.xlane.xlu0 %526
        %v528 = vrot.slane %v527, 4
        %v529 = vadd.f32 %v527, %v528
        %v530 = vrot.slane %v529, 2
        %v531 = vadd.f32 %v529, %v530
        %v532 = vrot.slane %v531, 1
        %v533 = vadd.f32 %v531, %v532
        %s534 = vtos %v533
        %v535 = vstv %s534
        %v536 = vmul.f32 %v535, %v467
        %v537 = vmul.f32 %v535, %v468
        %v540 = vrot.slane %v536, 7
        %v541 = vrot.slane %v537, 7
        %v544 = vsub.f32 %v507, %v540
        %v545 = vsub.f32 %v508, %v541
        %v546 = vmul.f32 %v544, %v544
        %v547 = vmul.f32 %v545, %v545
        %v550 = vrot.slane %v546, 2
        %v551 = vrot.slane %v547, 2
        %v554 = vsel %vm380, %v550, 0.0
        %v555 = vsel %vm380, %v551, 0.0
        %v556 = vadd.f32 %v554, %v555
        %557 = vadd.xlane.f32.xlu0 %v556
        %v558 = vpop.xlane.xlu0 %557
        %v559 = vrot.slane %v558, 4
        %v560 = vadd.f32 %v558, %v559
        %v561 = vrot.slane %v560, 2
        %v562 = vadd.f32 %v560, %v561
        %v563 = vrot.slane %v562, 1
        %v564 = vadd.f32 %v562, %v563
        %s565 = vtos %v564
        %s566 = sadd.f32 %s565, 1e-08
        %v567 = vstv %s566
        %v568 = vrsqrt.pop %v567
        %s569 = vtos %v568
        %v570 = vstv %s569
        %v571 = vmul.f32 %v544, %v570
        %v572 = vmul.f32 %v545, %v570
        %vm573 = vcmp.eq.s32.totalorder %v377, 2
        %v574 = vlaneseq
        %v575 = vshrl.u32 %v574, 7
        %v576 = vsub.s32 2, %v575
        %v577 = vrot.slane %v571, %v576
        %v578 = vlaneseq
        %v579 = vshrl.u32 %v578, 7
        %v580 = vsub.s32 2, %v579
        %v581 = vrot.slane %v572, %v580
        %v582 = vsel %vm573, %v577, %v478
        %v583 = vsel %vm573, %v581, %v479
        %v584 = vrot.slane %v372, 3
        %v585 = vrot.slane %v374, 3
        %v588 = vmul.f32 %v398, %v584
        %v589 = vmul.f32 %v399, %v585
        %v590 = vsel %vm380, %v588, 0.0
        %v591 = vsel %vm380, %v589, 0.0
        %v592 = vadd.f32 %v590, %v591
        %593 = vadd.xlane.f32.xlu0 %v592
        %v594 = vpop.xlane.xlu0 %593
        %v595 = vrot.slane %v594, 4
        %v596 = vadd.f32 %v594, %v595
        %v597 = vrot.slane %v596, 2
        %v598 = vadd.f32 %v596, %v597
        %v599 = vrot.slane %v598, 1
        %v600 = vadd.f32 %v598, %v599
        %s601 = vtos %v600
        %v602 = vstv %s601
        %v603 = vmul.f32 %v602, %v398
        %v604 = vmul.f32 %v602, %v399
        %v607 = vrot.slane %v603, 5
        %v608 = vrot.slane %v604, 5
        %v611 = vsub.f32 %v372, %v607
        %v612 = vsub.f32 %v374, %v608
        %v615 = vrot.slane %v611, 2
        %v616 = vrot.slane %v612, 2
        %v619 = vmul.f32 %v467, %v615
        %v620 = vmul.f32 %v468, %v616
        %v623 = vrot.slane %v619, 1
        %v624 = vrot.slane %v620, 1
        %v627 = vsel %vm380, %v623, 0.0
        %v628 = vsel %vm380, %v624, 0.0
        %v629 = vadd.f32 %v627, %v628
        %630 = vadd.xlane.f32.xlu0 %v629
        %v631 = vpop.xlane.xlu0 %630
        %v632 = vrot.slane %v631, 4
        %v633 = vadd.f32 %v631, %v632
        %v634 = vrot.slane %v633, 2
        %v635 = vadd.f32 %v633, %v634
        %v636 = vrot.slane %v635, 1
        %v637 = vadd.f32 %v635, %v636
        %s638 = vtos %v637
        %v639 = vstv %s638
        %v640 = vmul.f32 %v639, %v467
        %v641 = vmul.f32 %v639, %v468
        %v644 = vrot.slane %v640, 6
        %v645 = vrot.slane %v641, 6
        %v648 = vsub.f32 %v611, %v644
        %v649 = vsub.f32 %v612, %v645
        %v652 = vrot.slane %v648, 1
        %v653 = vrot.slane %v649, 1
        %v656 = vmul.f32 %v571, %v652
        %v657 = vmul.f32 %v572, %v653
        %v660 = vrot.slane %v656, 2
        %v661 = vrot.slane %v657, 2
        %v664 = vsel %vm380, %v660, 0.0
        %v665 = vsel %vm380, %v661, 0.0
        %v666 = vadd.f32 %v664, %v665
        %667 = vadd.xlane.f32.xlu0 %v666
        %v668 = vpop.xlane.xlu0 %667
        %v669 = vrot.slane %v668, 4
        %v670 = vadd.f32 %v668, %v669
        %v671 = vrot.slane %v670, 2
        %v672 = vadd.f32 %v670, %v671
        %v673 = vrot.slane %v672, 1
        %v674 = vadd.f32 %v672, %v673
        %s675 = vtos %v674
        %v676 = vstv %s675
        %v677 = vmul.f32 %v676, %v571
        %v678 = vmul.f32 %v676, %v572
        %v681 = vrot.slane %v677, 7
        %v682 = vrot.slane %v678, 7
        %v685 = vsub.f32 %v648, %v681
        %v686 = vsub.f32 %v649, %v682
        %v687 = vmul.f32 %v685, %v685
        %v688 = vmul.f32 %v686, %v686
        %v691 = vrot.slane %v687, 3
        %v692 = vrot.slane %v688, 3
        %v695 = vsel %vm380, %v691, 0.0
        %v696 = vsel %vm380, %v692, 0.0
        %v697 = vadd.f32 %v695, %v696
        %698 = vadd.xlane.f32.xlu0 %v697
        %v699 = vpop.xlane.xlu0 %698
        %v700 = vrot.slane %v699, 4
        %v701 = vadd.f32 %v699, %v700
        %v702 = vrot.slane %v701, 2
        %v703 = vadd.f32 %v701, %v702
        %v704 = vrot.slane %v703, 1
        %v705 = vadd.f32 %v703, %v704
        %s706 = vtos %v705
        %s707 = sadd.f32 %s706, 1e-08
        %v708 = vstv %s707
        %v709 = vrsqrt.pop %v708
        %s710 = vtos %v709
        %v711 = vstv %s710
        %v712 = vmul.f32 %v685, %v711
        %v713 = vmul.f32 %v686, %v711
        %vm714 = vcmp.eq.s32.totalorder %v377, 3
        %v715 = vlaneseq
        %v716 = vshrl.u32 %v715, 7
        %v717 = vsub.s32 3, %v716
        %v718 = vrot.slane %v712, %v717
        %v719 = vlaneseq
        %v720 = vshrl.u32 %v719, 7
        %v721 = vsub.s32 3, %v720
        %v722 = vrot.slane %v713, %v721
        %v723 = vsel %vm714, %v718, %v582
        %v724 = vsel %vm714, %v722, %v583
        %725 = vmatprep.subr.mxu0 0.0
        %726 = vmatpush1.xpose.msra.mxu0 0.0
        %727 = vmatprep.subr.mxu0 0.0
        %728 = vmatpush1.xpose.msra.mxu0 0.0
        %729 = vmatprep.subr.mxu0 0.0
        %730 = vmatpush1.xpose.msra.mxu0 0.0
        %731 = vmatprep.subr.mxu0 0.0
        %732 = vmatpush1.xpose.msra.mxu0 0.0
        %733 = vmatprep.subr.mxu0 0.0
        %734 = vmatpush1.xpose.msra.mxu0 0.0
        %735 = vmatprep.subr.mxu0 0.0
        %736 = vmatpush1.xpose.msra.mxu0 0.0
        %737 = vmatprep.subr.mxu0 0.0
        %738 = vmatpush1.xpose.msra.mxu0 0.0
        %739 = vmatprep.subr.mxu0 0.0
        %740 = vmatpush1.xpose.msra.mxu0 0.0
        %741 = vmatprep.subr.mxu0 0.0
        %742 = vmatpush1.xpose.msra.mxu0 0.0
        %743 = vmatprep.subr.mxu0 0.0
        %744 = vmatpush1.xpose.msra.mxu0 0.0
        %745 = vmatprep.subr.mxu0 0.0
        %746 = vmatpush1.xpose.msra.mxu0 0.0
        %747 = vmatprep.subr.mxu0 0.0
        %748 = vmatpush1.xpose.msra.mxu0 0.0
        %749 = vmatprep.subr.mxu0 0.0
        %750 = vmatpush1.xpose.msra.mxu0 0.0
        %751 = vmatprep.subr.mxu0 0.0
        %752 = vmatpush1.xpose.msra.mxu0 0.0
        %753 = vmatprep.subr.mxu0 0.0
        %754 = vmatpush1.xpose.msra.mxu0 0.0
        %755 = vmatprep.subr.mxu0 %v224
        %756 = vmatpush1.xpose.msra.mxu0 %v218
        %757 = vmatprep.subr.mxu0 0.0
        %758 = vmatpush2.xpose.msra.mxu0 0.0
        %759 = vmatprep.subr.mxu0 0.0
        %760 = vmatpush2.xpose.msra.mxu0 0.0
        %761 = vmatprep.subr.mxu0 0.0
        %762 = vmatpush2.xpose.msra.mxu0 0.0
        %763 = vmatprep.subr.mxu0 0.0
        %764 = vmatpush2.xpose.msra.mxu0 0.0
        %765 = vmatprep.subr.mxu0 0.0
        %766 = vmatpush2.xpose.msra.mxu0 0.0
        %767 = vmatprep.subr.mxu0 0.0
        %768 = vmatpush2.xpose.msra.mxu0 0.0
        %769 = vmatprep.subr.mxu0 0.0
        %770 = vmatpush2.xpose.msra.mxu0 0.0
        %771 = vmatprep.subr.mxu0 0.0
        %772 = vmatpush2.xpose.msra.mxu0 0.0
        %773 = vmatprep.subr.mxu0 0.0
        %774 = vmatpush2.xpose.msra.mxu0 0.0
        %775 = vmatprep.subr.mxu0 0.0
        %776 = vmatpush2.xpose.msra.mxu0 0.0
        %777 = vmatprep.subr.mxu0 0.0
        %778 = vmatpush2.xpose.msra.mxu0 0.0
        %779 = vmatprep.subr.mxu0 0.0
        %780 = vmatpush2.xpose.msra.mxu0 0.0
        %781 = vmatprep.subr.mxu0 0.0
        %782 = vmatpush2.xpose.msra.mxu0 0.0
        %783 = vmatprep.subr.mxu0 0.0
        %784 = vmatpush2.xpose.msra.mxu0 0.0
        %785 = vmatprep.subr.mxu0 0.0
        %786 = vmatpush2.xpose.msra.mxu0 0.0
        %787 = vmatprep.subr.mxu0 0.0
        %788 = vmatpush2.xpose.msra.mxu0 0.0
        %789 = vmatprep.mubr.f32.mxu0 %v724
        %790 = vmatmul.mubr.f32.gmra.mxu0 %v723
        %v791 = vpop.f32.mrf.mxu0
        %v792 = vadd.f32 0.0, %v791
        %v793 = vpop.f32.mrf.mxu0
        %794 = vdwg.mxu0
        %v796 = vsel %vm296, %v792, 0
        %798 = vmatprep.subr.mxu0 0.0
        %799 = vmatpush1.msra.mxu0 0.0
        %800 = vmatprep.subr.mxu0 0.0
        %801 = vmatpush1.msra.mxu0 0.0
        %802 = vmatprep.subr.mxu0 0.0
        %803 = vmatpush1.msra.mxu0 0.0
        %804 = vmatprep.subr.mxu0 0.0
        %805 = vmatpush1.msra.mxu0 0.0
        %806 = vmatprep.subr.mxu0 0.0
        %807 = vmatpush1.msra.mxu0 0.0
        %808 = vmatprep.subr.mxu0 0.0
        %809 = vmatpush1.msra.mxu0 0.0
        %810 = vmatprep.subr.mxu0 0.0
        %811 = vmatpush1.msra.mxu0 0.0
        %812 = vmatprep.subr.mxu0 0.0
        %813 = vmatpush1.msra.mxu0 0.0
        %814 = vmatprep.subr.mxu0 0.0
        %815 = vmatpush1.msra.mxu0 0.0
        %816 = vmatprep.subr.mxu0 0.0
        %817 = vmatpush1.msra.mxu0 0.0
        %818 = vmatprep.subr.mxu0 0.0
        %819 = vmatpush1.msra.mxu0 0.0
        %820 = vmatprep.subr.mxu0 0.0
        %821 = vmatpush1.msra.mxu0 0.0
        %822 = vmatprep.subr.mxu0 0.0
        %823 = vmatpush1.msra.mxu0 0.0
        %824 = vmatprep.subr.mxu0 0.0
        %825 = vmatpush1.msra.mxu0 0.0
        %826 = vmatprep.subr.mxu0 0.0
        %827 = vmatpush1.msra.mxu0 0.0
        %828 = vmatprep.subr.mxu0 %v303
        %829 = vmatpush1.msra.mxu0 %v301
        %830 = vmatprep.subr.mxu0 0.0
        %831 = vmatpush2.msra.mxu0 0.0
        %832 = vmatprep.subr.mxu0 0.0
        %833 = vmatpush2.msra.mxu0 0.0
        %834 = vmatprep.subr.mxu0 0.0
        %835 = vmatpush2.msra.mxu0 0.0
        %836 = vmatprep.subr.mxu0 0.0
        %837 = vmatpush2.msra.mxu0 0.0
        %838 = vmatprep.subr.mxu0 0.0
        %839 = vmatpush2.msra.mxu0 0.0
        %840 = vmatprep.subr.mxu0 0.0
        %841 = vmatpush2.msra.mxu0 0.0
        %842 = vmatprep.subr.mxu0 0.0
        %843 = vmatpush2.msra.mxu0 0.0
        %844 = vmatprep.subr.mxu0 0.0
        %845 = vmatpush2.msra.mxu0 0.0
        %846 = vmatprep.subr.mxu0 0.0
        %847 = vmatpush2.msra.mxu0 0.0
        %848 = vmatprep.subr.mxu0 0.0
        %849 = vmatpush2.msra.mxu0 0.0
        %850 = vmatprep.subr.mxu0 0.0
        %851 = vmatpush2.msra.mxu0 0.0
        %852 = vmatprep.subr.mxu0 0.0
        %853 = vmatpush2.msra.mxu0 0.0
        %854 = vmatprep.subr.mxu0 0.0
        %855 = vmatpush2.msra.mxu0 0.0
        %856 = vmatprep.subr.mxu0 0.0
        %857 = vmatpush2.msra.mxu0 0.0
        %858 = vmatprep.subr.mxu0 0.0
        %859 = vmatpush2.msra.mxu0 0.0
        %860 = vmatprep.subr.mxu0 0.0
        %861 = vmatpush2.msra.mxu0 0.0
        %862 = vmatprep.mubr.f32.mxu0 0.0
        %863 = vmatmul.mubr.f32.gmra.mxu0 %v796
        %v864 = vpop.f32.mrf.mxu0
        %v865 = vadd.f32 0.0, %v864
        %v866 = vpop.f32.mrf.mxu0
        %v867 = vadd.f32 0.0, %v866
        %868 = vdwg.mxu0
        %v871 = vcombine.low %v865, %v867
        %873 = vst [vmem:[%s205] sm:$0xff] %v871
        %vm874 = vcmask 27648
        %875 = vst.msk [vmem:[%s212] sm:$0xf] %vm874, %v792
        %s876 = sand.u32 %s84, 1
        %s877 = scalar_lea.sflag [#allocation4], %s876
        %s878 = sand.u32 %s84, 1
        %s879 = smul.addr %s878, 8
        %s880 = scalar_lea.vmem [#allocation5], %s879
        %s881 = sand.u32 %s110, 1
        %s882 = scalar_lea.sflag [#allocation7], %s881
        %s883 = sand.u32 %s110, 1
        %s884 = smul.addr %s883, 4
        %s885 = scalar_lea.vmem [#allocation6], %s884
        // Predicated region
        $region33: #{tpu_custom_call.1} parent=27 // pred_check
          %p886 = pneg %p94
        $region34: #{tpu_custom_call.1} parent=27 // pred_check_branch
          %888 = sbr.rel (%p886) target = $region36
        $region35: #{tpu_custom_call.1} parent=27 // pred_region
          %s890 = ssub.s32 128, 128
          %891 = vsyncadd %s877, %s890
          %s892 = smul.addr %s24, 2
          %s893 = smul.addr %s892, 64
          %s894 = scalar_lea.hbm %s2, %s893
          %s896 = sshll.u32 %s880, 4
          %s897 = int_to_ptr.vmem [resolvable:$true] %s896
          %899 = dma.vmem_to_hbm [thread:$0]  %s897, 128, %s894, %s877
        $region36: #{tpu_custom_call.1} parent=27 // pred_fallthru
          _
        // Predicated region
        $region37: #{tpu_custom_call.1} parent=27 // pred_check
          %p900 = pneg %p120
        $region38: #{tpu_custom_call.1} parent=27 // pred_check_branch
          %902 = sbr.rel (%p900) target = $region40
        $region39: #{tpu_custom_call.1} parent=27 // pred_region
          %s904 = ssub.s32 64, 64
          %905 = vsyncadd %s882, %s904
          %s906 = smul.addr %s24, 64
          %s907 = scalar_lea.hbm %s3, %s906
          %s909 = sshll.u32 %s885, 4
          %s910 = int_to_ptr.vmem [resolvable:$true] %s909
          %912 = dma.vmem_to_hbm [thread:$0]  %s910, 64, %s907, %s882
        $region40: #{tpu_custom_call.1} parent=27 // pred_fallthru
          _
      $region28: #{tpu_custom_call.1} parent=5 // pred_fallthru
        _
      %p913 = scmp.le.s32.totalorder 2, %s19
      // Predicated region
      $region41: #{tpu_custom_call.1} parent=5 // pred_check
        %p914 = pneg %p913
      $region42: #{tpu_custom_call.1} parent=5 // pred_check_branch
        %916 = sbr.rel (%p914) target = $region44
      $region43: #{tpu_custom_call.1} parent=5 // pred_region
        %s917 = ssub.s32 %s19, 2
        // Predicated region
        $region45: #{tpu_custom_call.1} parent=43 // pred_check
          %p918 = pneg %p100
        $region46: #{tpu_custom_call.1} parent=43 // pred_check_branch
          %920 = sbr.rel (%p918) target = $region48
        $region47: #{tpu_custom_call.1} parent=43 // pred_region
          %s921 = sand.u32 %s85, 1
          %s922 = scalar_lea.sflag [#allocation4], %s921
          %s923 = sand.u32 %s85, 1
          %s924 = smul.addr %s923, 8
          %s925 = scalar_lea.vmem [#allocation5], %s924
          %926 = dma.done %s922, 128
        $region48: #{tpu_custom_call.1} parent=43 // pred_fallthru
          _
        // Predicated region
        $region49: #{tpu_custom_call.1} parent=43 // pred_check
          %p927 = pneg %p126
        $region50: #{tpu_custom_call.1} parent=43 // pred_check_branch
          %929 = sbr.rel (%p927) target = $region52
        $region51: #{tpu_custom_call.1} parent=43 // pred_region
          %s930 = sand.u32 %s111, 1
          %s931 = scalar_lea.sflag [#allocation7], %s930
          %s932 = sand.u32 %s111, 1
          %s933 = smul.addr %s932, 4
          %s934 = scalar_lea.vmem [#allocation6], %s933
          %935 = dma.done %s931, 64
        $region52: #{tpu_custom_call.1} parent=43 // pred_fallthru
          _
      $region44: #{tpu_custom_call.1} parent=5 // pred_fallthru
        _
    $region6: #{tpu_custom_call.1} parent=1 // loop_footer
      %s23 = sadd.s32 1, %s19
    $region7: #{tpu_custom_call.1} parent=1 // loop_footer_branch
      %18 = sbr.rel target = $region3
    $region8: #{tpu_custom_call.1} parent=1 // loop_exit
      _
    %936 = vsyncpa [#allocation3], 1
    %s937 = scalar_lea.sflag [#allocation3], 1
    %938 = vsyncpa %s937, 1
    %939 = vsyncpa [#allocation4], 1
    %s940 = scalar_lea.sflag [#allocation4], 1
    %941 = vsyncpa %s940, 1
    %942 = vsyncpa [#allocation7], 1
    %s943 = scalar_lea.sflag [#allocation7], 1
    %944 = vsyncpa %s943, 1

</llo_original>
